<compile_context>
chip_gen: v7x
topology: tpu7x:2x2x1
jax: 0.10.0
libtpu: 0.0.40
codegen_flags: <defaults>
</compile_context>

<pallas_src>
import functools

import jax
import jax.numpy as jnp
from jax.experimental import pallas as pl
from jax.experimental.pallas import tpu as pltpu


def _joint_kernel(is_norm, D, C, M,
                  scores_ref, x_ref, w_enc_ref, w_mid_ref, bias_ref,
                  out_ref):
    x = x_ref[...]                                   # (TB, L)
    biases = bias_ref[...]                           # (1, D + C + D + M)
    b_enc = biases[:, :D]
    b_cls = biases[:, D:D + C]
    b1 = biases[:, D + C:2 * D + C]
    b2 = biases[:, 2 * D + C:]

    w_mid = w_mid_ref[...]                           # (D, C + D + M) = [w_cls | w1 | w2]
    w_cat = w_mid[:, :C + D]
    w2 = w_mid[:, C + D:]

    # --- category_model (stand-in): linear encoder + ReLU -> emb --------------
    emb = jnp.dot(x, w_enc_ref[...], preferred_element_type=jnp.float32)
    emb = jnp.maximum(emb + b_enc, 0.0)              # (TB, D)

    # --- classifier head + weight_prj first layer: ONE fused MXU matmul -------
    mid = jnp.dot(emb, w_cat, preferred_element_type=jnp.float32)   # (TB, C+D)
    cate = mid[:, :C] + b_cls                        # (TB, C)
    h = jnp.maximum(mid[:, C:] + b1, 0.0)            # (TB, D)

    # --- weight_prj second layer -> per-CM weights, softmax over M lanes ------
    wgt = jnp.dot(h, w2, preferred_element_type=jnp.float32) + b2   # (TB, M)
    wmax = jnp.max(wgt, axis=-1, keepdims=True)
    e = jnp.exp(wgt - wmax)
    inv = pl.reciprocal(jnp.sum(e, axis=-1, keepdims=True), approx=True)
    wsoft = e * inv                                  # (TB, M)

    # --- joint scoring ----------------------------------------------------------
    scores = scores_ref[...]                         # (TB, 2*M)  lane-dense
    s0 = scores[:, :M]                               # class-0 scores
    s1 = scores[:, M:]                               # class-1 scores
    if is_norm:
        # closed-form 2-class softmax over the class axis (exact)
        p0 = jax.nn.sigmoid(s0 - s1)
        p1 = 1.0 - p0
    else:
        p0, p1 = s0, s1
    o0 = jnp.sum(p0 * wsoft, axis=-1, keepdims=True)  # (TB, 1)
    o1 = jnp.sum(p1 * wsoft, axis=-1, keepdims=True)  # (TB, 1)

    # single lane-dense output slab: [out0 | out1 | cate]
    out_ref[...] = jnp.concatenate([o0, o1, cate], axis=-1)          # (TB, 2+C)


def scoring_joint(scores, x, params, *, is_norm=True, batch_tile=8):
    """Pallas-fused forward. Returns (out (B, 2), cate_out (B, C))."""
    B, _, M = scores.shape
    L = x.shape[1]
    D = params["w_enc"].shape[1]
    C = params["w_cls"].shape[1]

    TB = batch_tile
    B_pad = ((B + TB - 1) // TB) * TB

    # lane-dense 2-D scores slab: [class-0 scores | class-1 scores]
    scores_flat = scores.reshape(B, 2 * M).astype(jnp.float32)
    x = x.astype(jnp.float32)
    if B_pad != B:
        pad = ((0, B_pad - B), (0, 0))
        scores_flat = jnp.pad(scores_flat, pad)
        x = jnp.pad(x, pad)

    # pack the small weight matrices / biases into single VMEM slabs
    w_mid = jnp.concatenate([params["w_cls"], params["w1"], params["w2"]], axis=1)
    biases = jnp.concatenate(
        [params["b_enc"], params["b_cls"], params["b1"], params["b2"]], axis=1)

    kernel = functools.partial(_joint_kernel, is_norm, D, C, M)
    full = pl.pallas_call(
        kernel,
        out_shape=jax.ShapeDtypeStruct((B_pad, 2 + C), jnp.float32),
        grid=(B_pad // TB,),
        in_specs=[
            pl.BlockSpec((TB, 2 * M), lambda i: (i, 0)),          # scores
            pl.BlockSpec((TB, L), lambda i: (i, 0)),              # x
            pl.BlockSpec((L, D), lambda i: (0, 0)),               # w_enc
            pl.BlockSpec((D, C + D + M), lambda i: (0, 0)),       # [w_cls|w1|w2]
            pl.BlockSpec((1, 2 * D + C + M), lambda i: (0, 0)),   # packed biases
        ],
        out_specs=pl.BlockSpec((TB, 2 + C), lambda i: (i, 0)),
        compiler_params=pltpu.CompilerParams(
            dimension_semantics=("parallel",)),
    )(scores_flat, x, params["w_enc"], w_mid, biases)

    out = full[:B, :2]
    cate = full[:B, 2:]
    return out, cate


def _reference(scores, x, params, *, is_norm=True):
    """Pure-JAX reference mirroring the PyTorch forward semantics."""
    emb = jnp.maximum(x @ params["w_enc"] + params["b_enc"], 0.0)
    cate = emb @ params["w_cls"] + params["b_cls"]
    h = jnp.maximum(emb @ params["w1"] + params["b1"], 0.0)
    w = h @ params["w2"] + params["b2"]
    if is_norm:
        scores = jax.nn.softmax(scores, axis=1)
    w = jax.nn.softmax(w, axis=1)
    out = jnp.matmul(scores, w[:, :, None])[:, :, 0]
    return out, cate


def init_params(key, audio_len, out_dim, num_cms, num_classes):
    ks = jax.random.split(key, 5)
    s = 0.05
    return {
        "w_enc": s * jax.random.normal(ks[0], (audio_len, out_dim), jnp.float32),
        "b_enc": jnp.zeros((1, out_dim), jnp.float32),
        "w_cls": s * jax.random.normal(ks[1], (out_dim, num_classes), jnp.float32),
        "b_cls": jnp.zeros((1, num_classes), jnp.float32),
        "w1":    s * jax.random.normal(ks[2], (out_dim, out_dim), jnp.float32),
        "b1":    jnp.zeros((1, out_dim), jnp.float32),
        "w2":    s * jax.random.normal(ks[3], (out_dim, num_cms), jnp.float32),
        "b2":    jnp.zeros((1, num_cms), jnp.float32),
    }


if __name__ == "__main__":
    # config-equivalent small sizes
    B, AUDIO_LEN, OUT_DIM, NUM_CMS, NUM_CLASSES = 2, 256, 32, 4, 4
    IS_NORM = True

    key = jax.random.PRNGKey(0)
    k_scores, k_x, k_params = jax.random.split(key, 3)

    scores = jax.random.normal(k_scores, (B, 2, NUM_CMS), jnp.float32)
    x = jax.random.normal(k_x, (B, AUDIO_LEN), jnp.float32)
    params = init_params(k_params, AUDIO_LEN, OUT_DIM, NUM_CMS, NUM_CLASSES)

    out, cate_out = scoring_joint(scores, x, params, is_norm=IS_NORM)
    jax.block_until_ready((out, cate_out))

    ref_out, ref_cate = _reference(scores, x, params, is_norm=IS_NORM)
    assert out.shape == (B, 2) and cate_out.shape == (B, NUM_CLASSES)
    # cate path is exact-f32; joint-score path uses the approximate EUP reciprocal
    # in the CM-weight softmax, so it gets a slightly looser tolerance (values in [0,1]).
    assert jnp.allclose(cate_out, ref_cate, rtol=1e-5, atol=1e-5)
    assert jnp.allclose(out, ref_out, rtol=2e-2, atol=2e-2)

    print("KERNEL_OK")
</pallas_src>

<mosaic_0001>
module attributes {stable_mosaic.version = 11 : i64} {
  func.func @_joint_kernel(%arg0: i32, %arg1: memref<8x8xf32, #tpu.memory_space<vmem>>, %arg2: memref<8x256xf32, #tpu.memory_space<vmem>>, %arg3: memref<256x32xf32, #tpu.memory_space<vmem>>, %arg4: memref<32x40xf32, #tpu.memory_space<vmem>>, %arg5: memref<1x72xf32, #tpu.memory_space<vmem>>, %arg6: memref<8x6xf32, #tpu.memory_space<vmem>>) attributes {dimension_semantics = [#tpu.dimension_semantics<parallel>], iteration_bounds = array<i64: 1>, scalar_prefetch = 0 : i64, scratch_operands = 0 : i64, tpu.core_type = #tpu.core_type<tc>, window_params = [{transform_indices = @transform_0, window_bounds = array<i64: 8, 8>}, {transform_indices = @transform_1, window_bounds = array<i64: 8, 256>}, {pipeline_mode = #tpu.pipeline_mode<synchronous>, transform_indices = @transform_2, window_bounds = array<i64: 256, 32>}, {pipeline_mode = #tpu.pipeline_mode<synchronous>, transform_indices = @transform_3, window_bounds = array<i64: 32, 40>}, {pipeline_mode = #tpu.pipeline_mode<synchronous>, transform_indices = @transform_4, window_bounds = array<i64: 1, 72>}, {transform_indices = @transform_5, window_bounds = array<i64: 8, 6>}]} {
    %c0 = arith.constant 0 : index
    %c0_0 = arith.constant 0 : index
    %0 = vector.load %arg2[%c0, %c0_0] : memref<8x256xf32, #tpu.memory_space<vmem>>, vector<8x256xf32>
    %c0_1 = arith.constant 0 : index
    %c0_2 = arith.constant 0 : index
    %1 = vector.load %arg5[%c0_1, %c0_2] : memref<1x72xf32, #tpu.memory_space<vmem>>, vector<1x72xf32>
    %2 = vector.extract_strided_slice %1 {offsets = [0, 0], sizes = [1, 32], strides = [1, 1]} : vector<1x72xf32> to vector<1x32xf32>
    %3 = vector.extract_strided_slice %1 {offsets = [0, 32], sizes = [1, 4], strides = [1, 1]} : vector<1x72xf32> to vector<1x4xf32>
    %4 = vector.extract_strided_slice %1 {offsets = [0, 36], sizes = [1, 32], strides = [1, 1]} : vector<1x72xf32> to vector<1x32xf32>
    %5 = vector.extract_strided_slice %1 {offsets = [0, 68], sizes = [1, 4], strides = [1, 1]} : vector<1x72xf32> to vector<1x4xf32>
    %c0_3 = arith.constant 0 : index
    %c0_4 = arith.constant 0 : index
    %6 = vector.load %arg4[%c0_3, %c0_4] : memref<32x40xf32, #tpu.memory_space<vmem>>, vector<32x40xf32>
    %7 = vector.extract_strided_slice %6 {offsets = [0, 0], sizes = [32, 36], strides = [1, 1]} : vector<32x40xf32> to vector<32x36xf32>
    %8 = vector.extract_strided_slice %6 {offsets = [0, 36], sizes = [32, 4], strides = [1, 1]} : vector<32x40xf32> to vector<32x4xf32>
    %c0_5 = arith.constant 0 : index
    %c0_6 = arith.constant 0 : index
    %9 = vector.load %arg3[%c0_5, %c0_6] : memref<256x32xf32, #tpu.memory_space<vmem>>, vector<256x32xf32>
    %cst = arith.constant dense<0.000000e+00> : vector<8x32xf32>
    %10 = tpu.matmul %0, %9, %cst {dimension_numbers = #tpu.dot_dimension_numbers<[1], [0], [0], [1], [0, 0, 1, 1], [], []>} : vector<8x256xf32>, vector<256x32xf32>, vector<8x32xf32> -> vector<8x32xf32>
    %11 = vector.broadcast %2 : vector<1x32xf32> to vector<8x32xf32>
    %12 = arith.addf %10, %11 : vector<8x32xf32>
    %cst_7 = arith.constant 0.000000e+00 : f32
    %13 = vector.broadcast %cst_7 : f32 to vector<8x32xf32>
    %14 = arith.maximumf %12, %13 : vector<8x32xf32>
    %cst_8 = arith.constant dense<0.000000e+00> : vector<8x36xf32>
    %15 = tpu.matmul %14, %7, %cst_8 {dimension_numbers = #tpu.dot_dimension_numbers<[1], [0], [0], [1], [0, 0, 1, 1], [], []>} : vector<8x32xf32>, vector<32x36xf32>, vector<8x36xf32> -> vector<8x36xf32>
    %16 = vector.extract_strided_slice %15 {offsets = [0, 0], sizes = [8, 4], strides = [1, 1]} : vector<8x36xf32> to vector<8x4xf32>
    %17 = vector.broadcast %3 : vector<1x4xf32> to vector<8x4xf32>
    %18 = arith.addf %16, %17 : vector<8x4xf32>
    %19 = vector.extract_strided_slice %15 {offsets = [0, 4], sizes = [8, 32], strides = [1, 1]} : vector<8x36xf32> to vector<8x32xf32>
    %20 = vector.broadcast %4 : vector<1x32xf32> to vector<8x32xf32>
    %21 = arith.addf %19, %20 : vector<8x32xf32>
    %cst_9 = arith.constant 0.000000e+00 : f32
    %22 = vector.broadcast %cst_9 : f32 to vector<8x32xf32>
    %23 = arith.maximumf %21, %22 : vector<8x32xf32>
    %cst_10 = arith.constant dense<0.000000e+00> : vector<8x4xf32>
    %24 = tpu.matmul %23, %8, %cst_10 {dimension_numbers = #tpu.dot_dimension_numbers<[1], [0], [0], [1], [0, 0, 1, 1], [], []>} : vector<8x32xf32>, vector<32x4xf32>, vector<8x4xf32> -> vector<8x4xf32>
    %25 = vector.broadcast %5 : vector<1x4xf32> to vector<8x4xf32>
    %26 = arith.addf %24, %25 : vector<8x4xf32>
    %cst_11 = arith.constant dense<0xFF800000> : vector<8xf32>
    %27 = vector.multi_reduction <maximumf>, %26, %cst_11 [1] : vector<8x4xf32> to vector<8xf32>
    %28 = vector.shape_cast %27 : vector<8xf32> to vector<8x1xf32>
    %29 = vector.broadcast %28 : vector<8x1xf32> to vector<8x4xf32>
    %30 = arith.subf %26, %29 : vector<8x4xf32>
    %31 = math.exp %30 : vector<8x4xf32>
    %cst_12 = arith.constant dense<0.000000e+00> : vector<8xf32>
    %32 = vector.multi_reduction <add>, %31, %cst_12 [1] : vector<8x4xf32> to vector<8xf32>
    %33 = vector.shape_cast %32 : vector<8xf32> to vector<8x1xf32>
    %34 = tpu.reciprocal %33 {approx = true} : vector<8x1xf32> -> vector<8x1xf32>
    %35 = vector.broadcast %34 : vector<8x1xf32> to vector<8x4xf32>
    %36 = arith.mulf %31, %35 : vector<8x4xf32>
    %c0_13 = arith.constant 0 : index
    %c0_14 = arith.constant 0 : index
    %37 = vector.load %arg1[%c0_13, %c0_14] : memref<8x8xf32, #tpu.memory_space<vmem>>, vector<8x8xf32>
    %38 = vector.extract_strided_slice %37 {offsets = [0, 0], sizes = [8, 4], strides = [1, 1]} : vector<8x8xf32> to vector<8x4xf32>
    %39 = vector.extract_strided_slice %37 {offsets = [0, 4], sizes = [8, 4], strides = [1, 1]} : vector<8x8xf32> to vector<8x4xf32>
    %40 = arith.subf %38, %39 : vector<8x4xf32>
    %41 = arith.negf %40 : vector<8x4xf32>
    %42 = math.exp %41 : vector<8x4xf32>
    %cst_15 = arith.constant 1.000000e+00 : f32
    %43 = vector.broadcast %cst_15 : f32 to vector<8x4xf32>
    %44 = arith.addf %43, %42 : vector<8x4xf32>
    %45 = arith.divf %43, %44 : vector<8x4xf32>
    %cst_16 = arith.constant 1.000000e+00 : f32
    %46 = vector.broadcast %cst_16 : f32 to vector<8x4xf32>
    %47 = arith.subf %46, %45 : vector<8x4xf32>
    %48 = arith.mulf %45, %36 : vector<8x4xf32>
    %cst_17 = arith.constant dense<0.000000e+00> : vector<8xf32>
    %49 = vector.multi_reduction <add>, %48, %cst_17 [1] : vector<8x4xf32> to vector<8xf32>
    %50 = vector.shape_cast %49 : vector<8xf32> to vector<8x1xf32>
    %51 = arith.mulf %47, %36 : vector<8x4xf32>
    %cst_18 = arith.constant dense<0.000000e+00> : vector<8xf32>
    %52 = vector.multi_reduction <add>, %51, %cst_18 [1] : vector<8x4xf32> to vector<8xf32>
    %53 = vector.shape_cast %52 : vector<8xf32> to vector<8x1xf32>
    %54 = tpu.concatenate %50, %53, %18 in 1 : vector<8x1xf32>, vector<8x1xf32>, vector<8x4xf32> -> vector<8x6xf32>
    %c0_19 = arith.constant 0 : index
    %c0_20 = arith.constant 0 : index
    %55 = vector.load %arg6[%c0_19, %c0_20] : memref<8x6xf32, #tpu.memory_space<vmem>>, vector<8x6xf32>
    tpu.vector_store %arg6[%c0_19, %c0_20], %54 {strides = array<i32>} : memref<8x6xf32, #tpu.memory_space<vmem>>, vector<8x6xf32>,
    return
  }
  func.func @transform_0(%arg0: i32) -> (i32, i32) {
    %c0_i32 = arith.constant 0 : i32
    %c0_i32_0 = arith.constant 0 : i32
    return %arg0, %c0_i32 : i32, i32
  }
  func.func @transform_1(%arg0: i32) -> (i32, i32) {
    %c0_i32 = arith.constant 0 : i32
    %c0_i32_0 = arith.constant 0 : i32
    return %arg0, %c0_i32 : i32, i32
  }
  func.func @transform_2(%arg0: i32) -> (i32, i32) {
    %c0_i32 = arith.constant 0 : i32
    %c0_i32_0 = arith.constant 0 : i32
    %c0_i32_1 = arith.constant 0 : i32
    return %c0_i32, %c0_i32_0 : i32, i32
  }
  func.func @transform_3(%arg0: i32) -> (i32, i32) {
    %c0_i32 = arith.constant 0 : i32
    %c0_i32_0 = arith.constant 0 : i32
    %c0_i32_1 = arith.constant 0 : i32
    return %c0_i32, %c0_i32_0 : i32, i32
  }
  func.func @transform_4(%arg0: i32) -> (i32, i32) {
    %c0_i32 = arith.constant 0 : i32
    %c0_i32_0 = arith.constant 0 : i32
    %c0_i32_1 = arith.constant 0 : i32
    return %c0_i32, %c0_i32_0 : i32, i32
  }
  func.func @transform_5(%arg0: i32) -> (i32, i32) {
    %c0_i32 = arith.constant 0 : i32
    %c0_i32_0 = arith.constant 0 : i32
    return %arg0, %c0_i32 : i32, i32
  }
}

</mosaic_0001>

<llo_original>
// kernel: tpu_custom_call.1
$region0: #{tpu_custom_call.1}
  #allocation0 [shape = 'u32[]', space=smem, size = 0x4, offset = 0x4, fixed_abs, tag = 'smem constant byte address 0x4 - core index']
  #allocation1 [shape = 'u32[144,128]{1,0:T(1,128)}', space=vmem, size = 0x12000, scoped, tag = 'internal scratch']
  %s0 = inlined_call_operand.vmem [shape: f32[8,8], index: 0, kind: input, shape index: {}]
  %s1 = inlined_call_operand.vmem [shape: f32[8,256], index: 1, kind: input, shape index: {}]
  %s2 = inlined_call_operand.vmem [shape: f32[256,32], index: 2, kind: input, shape index: {}]
  %s3 = inlined_call_operand.vmem [shape: f32[32,40], index: 3, kind: input, shape index: {}]
  %s4 = inlined_call_operand.vmem [shape: f32[1,72], index: 4, kind: input, shape index: {}]
  %s5 = inlined_call_operand.hbm [shape: f32[8,6], index: 5, kind: output, shape index: {}]
  %s6 = sld [smem:[#allocation0]]
  $region30: #{tpu_custom_call.1} parent=0
    _
  %s8 = ssub.s32 1, %s6
  %s9 = scalar_select 0, %s8, %s6
  $region1: #{tpu_custom_call.1} parent=0
    #allocation2 [shape = 'u8[4096]{0}', space=vmem, size = 0x1000, scoped, tag = 'output window, operand 0, single buffered']
    #allocation3 [shape = 's32[1]{0}', space=sflag, size = 0x4, scoped, tag = 'scoped memory for tpu_custom_call.1']
    %10 = vsyncpa [#allocation3], 0
    // Predicated region
    $region2: #{tpu_custom_call.1} parent=1 // pred_check
      _
    $region3: #{tpu_custom_call.1} parent=1 // pred_check_branch
      %12 = sbr.rel (0) target = $region5
    $region4: #{tpu_custom_call.1} parent=1 // pred_region
      _
    $region5: #{tpu_custom_call.1} parent=1 // pred_fallthru
      _
    // Predicated region
    $region6: #{tpu_custom_call.1} parent=1 // pred_check
      _
    $region7: #{tpu_custom_call.1} parent=1 // pred_check_branch
      %14 = sbr.rel (0) target = $region9
    $region8: #{tpu_custom_call.1} parent=1 // pred_region
      _
    $region9: #{tpu_custom_call.1} parent=1 // pred_fallthru
      _
    // Predicated region
    $region10: #{tpu_custom_call.1} parent=1 // pred_check
      _
    $region11: #{tpu_custom_call.1} parent=1 // pred_check_branch
      %16 = sbr.rel (0) target = $region13
    $region12: #{tpu_custom_call.1} parent=1 // pred_region
      _
    $region13: #{tpu_custom_call.1} parent=1 // pred_fallthru
      _
    // Predicated region
    $region14: #{tpu_custom_call.1} parent=1 // pred_check
      _
    $region15: #{tpu_custom_call.1} parent=1 // pred_check_branch
      %18 = sbr.rel (0) target = $region17
    $region16: #{tpu_custom_call.1} parent=1 // pred_region
      _
    $region17: #{tpu_custom_call.1} parent=1 // pred_fallthru
      _
    // Predicated region
    $region18: #{tpu_custom_call.1} parent=1 // pred_check
      _
    $region19: #{tpu_custom_call.1} parent=1 // pred_check_branch
      %20 = sbr.rel (0) target = $region21
    $region20: #{tpu_custom_call.1} parent=1 // pred_region
      _
    $region21: #{tpu_custom_call.1} parent=1 // pred_fallthru
      _
    %v21 = vld [vmem:[%s1] sm:$0xff]
    %v22 = vld [vmem:[%s1 + $0x8] sm:$0xff]
    %v23 = vld [vmem:[%s4] sm:$0x1]
    %v24 = vld [vmem:[%s3] sm:$0xff]
    %v25 = vld [vmem:[%s3 + $0x8] sm:$0xff]
    %v26 = vld [vmem:[%s3 + $0x10] sm:$0xff]
    %v27 = vld [vmem:[%s3 + $0x18] sm:$0xff]
    %v28 = vld [vmem:[%s2] sm:$0xff]
    %v29 = vld [vmem:[%s2 + $0x8] sm:$0xff]
    %v30 = vld [vmem:[%s2 + $0x10] sm:$0xff]
    %v31 = vld [vmem:[%s2 + $0x18] sm:$0xff]
    %v32 = vld [vmem:[%s2 + $0x20] sm:$0xff]
    %v33 = vld [vmem:[%s2 + $0x28] sm:$0xff]
    %v34 = vld [vmem:[%s2 + $0x30] sm:$0xff]
    %v35 = vld [vmem:[%s2 + $0x38] sm:$0xff]
    %v36 = vld [vmem:[%s2 + $0x40] sm:$0xff]
    %v37 = vld [vmem:[%s2 + $0x48] sm:$0xff]
    %v38 = vld [vmem:[%s2 + $0x50] sm:$0xff]
    %v39 = vld [vmem:[%s2 + $0x58] sm:$0xff]
    %v40 = vld [vmem:[%s2 + $0x60] sm:$0xff]
    %v41 = vld [vmem:[%s2 + $0x68] sm:$0xff]
    %v42 = vld [vmem:[%s2 + $0x70] sm:$0xff]
    %v43 = vld [vmem:[%s2 + $0x78] sm:$0xff]
    %v44 = vld [vmem:[%s2 + $0x80] sm:$0xff]
    %v45 = vld [vmem:[%s2 + $0x88] sm:$0xff]
    %v46 = vld [vmem:[%s2 + $0x90] sm:$0xff]
    %v47 = vld [vmem:[%s2 + $0x98] sm:$0xff]
    %v48 = vld [vmem:[%s2 + $0xa0] sm:$0xff]
    %v49 = vld [vmem:[%s2 + $0xa8] sm:$0xff]
    %v50 = vld [vmem:[%s2 + $0xb0] sm:$0xff]
    %v51 = vld [vmem:[%s2 + $0xb8] sm:$0xff]
    %v52 = vld [vmem:[%s2 + $0xc0] sm:$0xff]
    %v53 = vld [vmem:[%s2 + $0xc8] sm:$0xff]
    %v54 = vld [vmem:[%s2 + $0xd0] sm:$0xff]
    %v55 = vld [vmem:[%s2 + $0xd8] sm:$0xff]
    %v56 = vld [vmem:[%s2 + $0xe0] sm:$0xff]
    %v57 = vld [vmem:[%s2 + $0xe8] sm:$0xff]
    %v58 = vld [vmem:[%s2 + $0xf0] sm:$0xff]
    %v59 = vld [vmem:[%s2 + $0xf8] sm:$0xff]
    %v61 = vlaneseq
    %v62 = vshrl.u32 %v61, 7
    %v63 = vsub.s32 0, %v62
    %v64 = vrot.slane %v23, %v63
    %66 = vmatprep.subr.mxu0 0.0
    %67 = vmatpush1.msra.mxu0 %v28
    %68 = vmatprep.subr.mxu0 0.0
    %69 = vmatpush1.msra.mxu0 %v29
    %70 = vmatprep.subr.mxu0 0.0
    %71 = vmatpush1.msra.mxu0 %v30
    %72 = vmatprep.subr.mxu0 0.0
    %73 = vmatpush1.msra.mxu0 %v31
    %74 = vmatprep.subr.mxu0 0.0
    %75 = vmatpush1.msra.mxu0 %v32
    %76 = vmatprep.subr.mxu0 0.0
    %77 = vmatpush1.msra.mxu0 %v33
    %78 = vmatprep.subr.mxu0 0.0
    %79 = vmatpush1.msra.mxu0 %v34
    %80 = vmatprep.subr.mxu0 0.0
    %81 = vmatpush1.msra.mxu0 %v35
    %82 = vmatprep.subr.mxu0 0.0
    %83 = vmatpush1.msra.mxu0 %v36
    %84 = vmatprep.subr.mxu0 0.0
    %85 = vmatpush1.msra.mxu0 %v37
    %86 = vmatprep.subr.mxu0 0.0
    %87 = vmatpush1.msra.mxu0 %v38
    %88 = vmatprep.subr.mxu0 0.0
    %89 = vmatpush1.msra.mxu0 %v39
    %90 = vmatprep.subr.mxu0 0.0
    %91 = vmatpush1.msra.mxu0 %v40
    %92 = vmatprep.subr.mxu0 0.0
    %93 = vmatpush1.msra.mxu0 %v41
    %94 = vmatprep.subr.mxu0 0.0
    %95 = vmatpush1.msra.mxu0 %v42
    %96 = vmatprep.subr.mxu0 0.0
    %97 = vmatpush1.msra.mxu0 %v43
    %98 = vmatprep.subr.mxu0 0.0
    %99 = vmatpush1.msra.mxu0 %v44
    %100 = vmatprep.subr.mxu0 0.0
    %101 = vmatpush1.msra.mxu0 %v45
    %102 = vmatprep.subr.mxu0 0.0
    %103 = vmatpush1.msra.mxu0 %v46
    %104 = vmatprep.subr.mxu0 0.0
    %105 = vmatpush1.msra.mxu0 %v47
    %106 = vmatprep.subr.mxu0 0.0
    %107 = vmatpush1.msra.mxu0 %v48
    %108 = vmatprep.subr.mxu0 0.0
    %109 = vmatpush1.msra.mxu0 %v49
    %110 = vmatprep.subr.mxu0 0.0
    %111 = vmatpush1.msra.mxu0 %v50
    %112 = vmatprep.subr.mxu0 0.0
    %113 = vmatpush1.msra.mxu0 %v51
    %114 = vmatprep.subr.mxu0 0.0
    %115 = vmatpush1.msra.mxu0 %v52
    %116 = vmatprep.subr.mxu0 0.0
    %117 = vmatpush1.msra.mxu0 %v53
    %118 = vmatprep.subr.mxu0 0.0
    %119 = vmatpush1.msra.mxu0 %v54
    %120 = vmatprep.subr.mxu0 0.0
    %121 = vmatpush1.msra.mxu0 %v55
    %122 = vmatprep.subr.mxu0 0.0
    %123 = vmatpush1.msra.mxu0 %v56
    %124 = vmatprep.subr.mxu0 0.0
    %125 = vmatpush1.msra.mxu0 %v57
    %126 = vmatprep.subr.mxu0 0.0
    %127 = vmatpush1.msra.mxu0 %v58
    %128 = vmatprep.subr.mxu0 0.0
    %129 = vmatpush1.msra.mxu0 %v59
    %130 = vmatprep.mubr.f32.mxu0 %v22
    %131 = vmatmul.mubr.f32.gmra.mrb[0].mxu0 %v21
    %v132 = vpop.f32.mrb[0].mxu0
    %v133 = vadd.f32 %v64, %v132
    %v134 = vpop.f32.mrb[0].mxu0
    %135 = vdwg.mxu0
    %v136 = vmax.f32 %v133, 0.0
    %vm137 = vcmask 261120
    %v139 = vsel %vm137, %v136, 0
    %141 = vmatprep.subr.mxu0 0.0
    %142 = vmatpush1.msra.mxu0 %v24
    %143 = vmatprep.subr.mxu0 0.0
    %144 = vmatpush1.msra.mxu0 %v25
    %145 = vmatprep.subr.mxu0 0.0
    %146 = vmatpush1.msra.mxu0 %v26
    %147 = vmatprep.subr.mxu0 0.0
    %148 = vmatpush1.msra.mxu0 %v27
    %149 = vmatprep.subr.mxu0 0.0
    %150 = vmatpush1.msra.mxu0 0.0
    %151 = vmatprep.subr.mxu0 0.0
    %152 = vmatpush1.msra.mxu0 0.0
    %153 = vmatprep.subr.mxu0 0.0
    %154 = vmatpush1.msra.mxu0 0.0
    %155 = vmatprep.subr.mxu0 0.0
    %156 = vmatpush1.msra.mxu0 0.0
    %157 = vmatprep.subr.mxu0 0.0
    %158 = vmatpush1.msra.mxu0 0.0
    %159 = vmatprep.subr.mxu0 0.0
    %160 = vmatpush1.msra.mxu0 0.0
    %161 = vmatprep.subr.mxu0 0.0
    %162 = vmatpush1.msra.mxu0 0.0
    %163 = vmatprep.subr.mxu0 0.0
    %164 = vmatpush1.msra.mxu0 0.0
    %165 = vmatprep.subr.mxu0 0.0
    %166 = vmatpush1.msra.mxu0 0.0
    %167 = vmatprep.subr.mxu0 0.0
    %168 = vmatpush1.msra.mxu0 0.0
    %169 = vmatprep.subr.mxu0 0.0
    %170 = vmatpush1.msra.mxu0 0.0
    %171 = vmatprep.subr.mxu0 0.0
    %172 = vmatpush1.msra.mxu0 0.0
    %173 = vmatprep.subr.mxu0 0.0
    %174 = vmatpush1.msra.mxu0 0.0
    %175 = vmatprep.subr.mxu0 0.0
    %176 = vmatpush1.msra.mxu0 0.0
    %177 = vmatprep.subr.mxu0 0.0
    %178 = vmatpush1.msra.mxu0 0.0
    %179 = vmatprep.subr.mxu0 0.0
    %180 = vmatpush1.msra.mxu0 0.0
    %181 = vmatprep.subr.mxu0 0.0
    %182 = vmatpush1.msra.mxu0 0.0
    %183 = vmatprep.subr.mxu0 0.0
    %184 = vmatpush1.msra.mxu0 0.0
    %185 = vmatprep.subr.mxu0 0.0
    %186 = vmatpush1.msra.mxu0 0.0
    %187 = vmatprep.subr.mxu0 0.0
    %188 = vmatpush1.msra.mxu0 0.0
    %189 = vmatprep.subr.mxu0 0.0
    %190 = vmatpush1.msra.mxu0 0.0
    %191 = vmatprep.subr.mxu0 0.0
    %192 = vmatpush1.msra.mxu0 0.0
    %193 = vmatprep.subr.mxu0 0.0
    %194 = vmatpush1.msra.mxu0 0.0
    %195 = vmatprep.subr.mxu0 0.0
    %196 = vmatpush1.msra.mxu0 0.0
    %197 = vmatprep.subr.mxu0 0.0
    %198 = vmatpush1.msra.mxu0 0.0
    %199 = vmatprep.subr.mxu0 0.0
    %200 = vmatpush1.msra.mxu0 0.0
    %201 = vmatprep.subr.mxu0 0.0
    %202 = vmatpush1.msra.mxu0 0.0
    %203 = vmatprep.subr.mxu0 0.0
    %204 = vmatpush1.msra.mxu0 0.0
    %205 = vmatprep.mubr.f32.mxu0 0.0
    %206 = vmatmul.mubr.f32.gmra.mrb[0].mxu0 %v139
    %v207 = vpop.f32.mrb[0].mxu0
    %v208 = vadd.f32 0.0, %v207
    %v209 = vpop.f32.mrb[0].mxu0
    %210 = vdwg.mxu0
    %211 = vrot.lane.b32.xlu0 %v64, 96
    %v212 = vpop.permute.xlu0 %211
    %v214 = vadd.f32 %v208, %v212
    %v215 = vmax.f32 %v214, 0.0
    %217 = vrot.lane.b32.xlu0 %v215, 124
    %v218 = vpop.permute.xlu0 %217
    %223 = vrot.lane.b32.xlu0 %v24, 92
    %v224 = vpop.permute.xlu0 %223
    %225 = vrot.lane.b32.xlu0 %v25, 92
    %v226 = vpop.permute.xlu0 %225
    %227 = vrot.lane.b32.xlu0 %v26, 92
    %v228 = vpop.permute.xlu0 %227
    %229 = vrot.lane.b32.xlu0 %v27, 92
    %v230 = vpop.permute.xlu0 %229
    %235 = vrot.lane.b32.xlu0 %v64, 60
    %v236 = vpop.permute.xlu0 %235
    %v238 = vsel %vm137, %v218, 0
    %240 = vmatprep.subr.mxu0 0.0
    %241 = vmatpush1.msra.mxu0 %v224
    %242 = vmatprep.subr.mxu0 0.0
    %243 = vmatpush1.msra.mxu0 %v226
    %244 = vmatprep.subr.mxu0 0.0
    %245 = vmatpush1.msra.mxu0 %v228
    %246 = vmatprep.subr.mxu0 0.0
    %247 = vmatpush1.msra.mxu0 %v230
    %248 = vmatprep.subr.mxu0 0.0
    %249 = vmatpush1.msra.mxu0 0.0
    %250 = vmatprep.subr.mxu0 0.0
    %251 = vmatpush1.msra.mxu0 0.0
    %252 = vmatprep.subr.mxu0 0.0
    %253 = vmatpush1.msra.mxu0 0.0
    %254 = vmatprep.subr.mxu0 0.0
    %255 = vmatpush1.msra.mxu0 0.0
    %256 = vmatprep.subr.mxu0 0.0
    %257 = vmatpush1.msra.mxu0 0.0
    %258 = vmatprep.subr.mxu0 0.0
    %259 = vmatpush1.msra.mxu0 0.0
    %260 = vmatprep.subr.mxu0 0.0
    %261 = vmatpush1.msra.mxu0 0.0
    %262 = vmatprep.subr.mxu0 0.0
    %263 = vmatpush1.msra.mxu0 0.0
    %264 = vmatprep.subr.mxu0 0.0
    %265 = vmatpush1.msra.mxu0 0.0
    %266 = vmatprep.subr.mxu0 0.0
    %267 = vmatpush1.msra.mxu0 0.0
    %268 = vmatprep.subr.mxu0 0.0
    %269 = vmatpush1.msra.mxu0 0.0
    %270 = vmatprep.subr.mxu0 0.0
    %271 = vmatpush1.msra.mxu0 0.0
    %272 = vmatprep.subr.mxu0 0.0
    %273 = vmatpush1.msra.mxu0 0.0
    %274 = vmatprep.subr.mxu0 0.0
    %275 = vmatpush1.msra.mxu0 0.0
    %276 = vmatprep.subr.mxu0 0.0
    %277 = vmatpush1.msra.mxu0 0.0
    %278 = vmatprep.subr.mxu0 0.0
    %279 = vmatpush1.msra.mxu0 0.0
    %280 = vmatprep.subr.mxu0 0.0
    %281 = vmatpush1.msra.mxu0 0.0
    %282 = vmatprep.subr.mxu0 0.0
    %283 = vmatpush1.msra.mxu0 0.0
    %284 = vmatprep.subr.mxu0 0.0
    %285 = vmatpush1.msra.mxu0 0.0
    %286 = vmatprep.subr.mxu0 0.0
    %287 = vmatpush1.msra.mxu0 0.0
    %288 = vmatprep.subr.mxu0 0.0
    %289 = vmatpush1.msra.mxu0 0.0
    %290 = vmatprep.subr.mxu0 0.0
    %291 = vmatpush1.msra.mxu0 0.0
    %292 = vmatprep.subr.mxu0 0.0
    %293 = vmatpush1.msra.mxu0 0.0
    %294 = vmatprep.subr.mxu0 0.0
    %295 = vmatpush1.msra.mxu0 0.0
    %296 = vmatprep.subr.mxu0 0.0
    %297 = vmatpush1.msra.mxu0 0.0
    %298 = vmatprep.subr.mxu0 0.0
    %299 = vmatpush1.msra.mxu0 0.0
    %300 = vmatprep.subr.mxu0 0.0
    %301 = vmatpush1.msra.mxu0 0.0
    %302 = vmatprep.subr.mxu0 0.0
    %303 = vmatpush1.msra.mxu0 0.0
    %304 = vmatprep.mubr.f32.mxu0 0.0
    %305 = vmatmul.mubr.f32.gmra.mrb[0].mxu0 %v238
    %v306 = vpop.f32.mrb[0].mxu0
    %v307 = vadd.f32 %v236, %v306
    %v308 = vpop.f32.mrb[0].mxu0
    %309 = vdwg.mxu0
    %vm310 = vcmask 31744
    %v311 = vsel %vm310, %v307, -inf
    %312 = vmax.xlane.f32.xlu0 %v311
    %v313 = vpop.xlane.xlu0 %312
    %v314 = vsub.f32 %v307, %v313
    %v315 = vmul.f32 %v314, 1.442695
    %v316 = vpow.pop %v315
    %v317 = vsel %vm310, %v316, 0.0
    %318 = vadd.xlane.f32.xlu0 %v317
    %v319 = vpop.xlane.xlu0 %318
    %v320 = vrcp.pop %v319
    %v321 = vmul.f32 %v316, %v320
    %v322 = vld [vmem:[%s0] sm:$0xff]
    %324 = vrot.lane.b32.xlu0 %v322, 124
    %v325 = vpop.permute.xlu0 %324
    %v327 = vsub.f32 %v322, %v325
    %v328 = vxor.u32 %v327, 2147483648
    %v329 = vmul.f32 %v328, 1.442695
    %v330 = vpow.pop %v329
    %v331 = vadd.f32 %v330, 1.0
    %v332 = vrcp.pop %v331
    %v333 = vmul.f32 1.0, %v332
    %v334 = vsub.f32 1.0, %v333
    %v335 = vmul.f32 %v333, %v321
    %v336 = vsel %vm310, %v335, 0.0
    %337 = vadd.xlane.f32.xlu0 %v336
    %v338 = vpop.xlane.xlu0 %337
    %v339 = vmul.f32 %v334, %v321
    %v340 = vsel %vm310, %v339, 0.0
    %341 = vadd.xlane.f32.xlu0 %v340
    %v342 = vpop.xlane.xlu0 %341
    %344 = vrot.lane.b32.xlu0 %v214, 2
    %v345 = vpop.permute.xlu0 %344
    %vm347 = vcmask 7168
    %v348 = vsel %vm347, %v338, %v342
    %vm349 = vcmask 15360
    %v350 = vsel %vm349, %v348, %v345
    %vm351 = vcmask 48128
    %352 = vst.msk [vmem:[#allocation2] sm:$0xff] %vm351, %v350
    // Predicated region
    $region22: #{tpu_custom_call.1} parent=1 // pred_check
      _
    $region23: #{tpu_custom_call.1} parent=1 // pred_check_branch
      %354 = sbr.rel (0) target = $region25
    $region24: #{tpu_custom_call.1} parent=1 // pred_region
      %s356 = ssub.s32 128, 128
      %357 = vsyncadd [#allocation3], %s356
      %s359 = sshll.u32 [#allocation2], 4
      %s360 = int_to_ptr.vmem [resolvable:$true] %s359
      %362 = dma.vmem_to_hbm [thread:$0]  %s360, 128, %s5, [#allocation3]
    $region25: #{tpu_custom_call.1} parent=1 // pred_fallthru
      _
    // Predicated region
    $region26: #{tpu_custom_call.1} parent=1 // pred_check
      _
    $region27: #{tpu_custom_call.1} parent=1 // pred_check_branch
      %364 = sbr.rel (0) target = $region29
    $region28: #{tpu_custom_call.1} parent=1 // pred_region
      %365 = dma.done [#allocation3], 128
    $region29: #{tpu_custom_call.1} parent=1 // pred_fallthru
      _
    %366 = vsyncpa [#allocation3], 1

</llo_original>
